<compile_context>
chip_gen: v5e
topology: v5e:2x2
jax: 0.10.0
libtpu: 0.0.40
codegen_flags: <defaults>
</compile_context>

<pallas_src>
import functools
import math

import jax
import jax.numpy as jnp
import numpy as np
from jax.experimental import pallas as pl
from jax.experimental.pallas import tpu as pltpu

NEG_SLOPE = 0.01                      # nn.LeakyReLU() default
VMEM_LIMIT = 32 * 1024 * 1024         # safe on v5e/v6e/v7x; raise for prod sizes


# ---------------------------------------------------------------------------
# Pallas kernels
# ---------------------------------------------------------------------------
def _conv_lrelu_kernel(ph_ref, w_ref, b_ref, o_ref, *, ho, wo, cin):
    """Stride-2 3x3 conv + bias + LeakyReLU for one batch element.

    ph_ref : (4, Ho+1, Wo+1, Cin)  space-to-depth phases of the padded input
    w_ref  : (9*Cin, Cout)         packed conv weight (tap-major, chan-minor)
    b_ref  : (1, Cout)             bias (f32)
    o_ref  : (1, Ho*Wo, Cout)      output (bf16)
    """
    phases = [ph_ref[0], ph_ref[1], ph_ref[2], ph_ref[3]]   # each (Ho+1, Wo+1, Cin)
    taps = []
    for dy in range(3):
        for dx in range(3):
            p = phases[2 * (dy % 2) + (dx % 2)]
            taps.append(p[dy // 2: dy // 2 + ho, dx // 2: dx // 2 + wo, :])
    lhs = jnp.concatenate(taps, axis=-1).reshape(ho * wo, 9 * cin)   # bf16
    acc = jnp.dot(lhs, w_ref[...], preferred_element_type=jnp.float32)
    acc = acc + b_ref[...]
    o_ref[0] = jnp.where(acc >= 0, acc, NEG_SLOPE * acc).astype(o_ref.dtype)


def _conv_linear_kernel(ph_ref, wc_ref, bc_ref, wl_ref, bl_ref, o_ref, *, cin):
    """Fused tail: final (2x2 -> 1x1) stride-2 conv + LeakyReLU + EqualLinear.

    ph_ref : (4, 2, 2, Cin)    phases of the padded 2x2 input
    wc_ref : (9*Cin, Cout)     packed conv weight (bf16)
    bc_ref : (1, Cout)         conv bias (f32)
    wl_ref : (Cout, Dout)      pre-scaled EqualLinear weight (bf16)
    bl_ref : (1, Dout)         EqualLinear bias (f32)
    o_ref  : (1, Dout)         output (f32)
    """
    phases = [ph_ref[0], ph_ref[1], ph_ref[2], ph_ref[3]]   # each (2, 2, Cin)
    taps = []
    for dy in range(3):
        for dx in range(3):
            p = phases[2 * (dy % 2) + (dx % 2)]
            taps.append(p[dy // 2: dy // 2 + 1, dx // 2: dx // 2 + 1, :])
    lhs = jnp.concatenate(taps, axis=-1).reshape(1, 9 * cin)          # bf16
    h = jnp.dot(lhs, wc_ref[...], preferred_element_type=jnp.float32)
    h = h + bc_ref[...]
    h = jnp.where(h >= 0, h, NEG_SLOPE * h)                           # (1, Cout) f32
    out = jnp.dot(h.astype(wl_ref.dtype), wl_ref[...],
                  preferred_element_type=jnp.float32) + bl_ref[...]
    o_ref[...] = out.astype(o_ref.dtype)


# ---------------------------------------------------------------------------
# Glue (cheap data rearrangement, single pass over the data — no 9x im2col)
# ---------------------------------------------------------------------------
def _space_to_depth_phases(x_nhwc):
    """(B, H, W, C) -> (B*4, H//2+1, W//2+1, C) phases of the pad-1 input.

    phase index k = 2*py + px holds padded[2i+py, 2j+px]."""
    B, H, W, C = x_nhwc.shape
    Ho, Wo = H // 2, W // 2
    xp = jnp.pad(x_nhwc, ((0, 0), (1, 1), (1, 1), (0, 0)))
    xp = xp.reshape(B, Ho + 1, 2, Wo + 1, 2, C)
    ph = jnp.transpose(xp, (0, 2, 4, 1, 3, 5))          # (B, 2, 2, Ho+1, Wo+1, C)
    return ph.reshape(B * 4, Ho + 1, Wo + 1, C)


def _pack_conv_weight(w_hwio):
    """HWIO (3,3,Cin,Cout) -> (9*Cin, Cout), tap-major / channel-minor, bf16."""
    k0, k1, cin, cout = w_hwio.shape
    return w_hwio.reshape(k0 * k1 * cin, cout).astype(jnp.bfloat16)


# ---------------------------------------------------------------------------
# Wrappers
# ---------------------------------------------------------------------------
def conv3x3_s2_lrelu(x_nhwc, w_hwio, b):
    """Conv2d(k=3, stride=2, pad=1) + LeakyReLU(0.01).  x: (B,H,W,Cin) bf16."""
    B, H, W, Cin = x_nhwc.shape
    Cout = w_hwio.shape[-1]
    Ho, Wo = H // 2, W // 2
    HW = Ho * Wo

    ph = _space_to_depth_phases(x_nhwc)                 # (B*4, Ho+1, Wo+1, Cin) bf16
    w_flat = _pack_conv_weight(w_hwio)                  # (9*Cin, Cout) bf16
    b2 = b.reshape(1, Cout).astype(jnp.float32)

    kernel = functools.partial(_conv_lrelu_kernel, ho=Ho, wo=Wo, cin=Cin)
    out = pl.pallas_call(
        kernel,
        out_shape=jax.ShapeDtypeStruct((B, HW, Cout), jnp.bfloat16),
        grid=(B,),
        in_specs=[
            pl.BlockSpec((4, Ho + 1, Wo + 1, Cin), lambda bi: (bi, 0, 0, 0)),
            pl.BlockSpec((9 * Cin, Cout), lambda bi: (0, 0)),   # grid-invariant
            pl.BlockSpec((1, Cout), lambda bi: (0, 0)),
        ],
        out_specs=pl.BlockSpec((1, HW, Cout), lambda bi: (bi, 0, 0)),
        compiler_params=pltpu.CompilerParams(
            dimension_semantics=("parallel",),
            vmem_limit_bytes=VMEM_LIMIT),
    )(ph, w_flat, b2)
    return out.reshape(B, Ho, Wo, Cout)


def conv_last_plus_linear(x_nhwc, w_hwio, b_conv, w_lin, b_lin, lr_mul=1.0):
    """Fused final conv (2x2 -> 1x1) + LeakyReLU + EqualLinear."""
    B, H, W, Cin = x_nhwc.shape
    assert H == 2 and W == 2, "final stride-2 conv must collapse spatial to 1x1"
    Cout = w_hwio.shape[-1]
    out_dim, in_dim = w_lin.shape

    ph = _space_to_depth_phases(x_nhwc)                 # (B*4, 2, 2, Cin) bf16
    wc = _pack_conv_weight(w_hwio)                      # (9*Cin, Cout) bf16
    bc = b_conv.reshape(1, Cout).astype(jnp.float32)
    scale = (1.0 / math.sqrt(in_dim)) * lr_mul          # EqualLinear weight scaling
    wl = (w_lin * scale).T.astype(jnp.bfloat16)         # (in_dim, out_dim)
    bl = (b_lin * lr_mul).reshape(1, out_dim).astype(jnp.float32)

    kernel = functools.partial(_conv_linear_kernel, cin=Cin)
    return pl.pallas_call(
        kernel,
        out_shape=jax.ShapeDtypeStruct((B, out_dim), jnp.float32),
        grid=(B,),
        in_specs=[
            pl.BlockSpec((4, 2, 2, Cin), lambda bi: (bi, 0, 0, 0)),
            pl.BlockSpec((9 * Cin, Cout), lambda bi: (0, 0)),
            pl.BlockSpec((1, Cout), lambda bi: (0, 0)),
            pl.BlockSpec((in_dim, out_dim), lambda bi: (0, 0)),
            pl.BlockSpec((1, out_dim), lambda bi: (0, 0)),
        ],
        out_specs=pl.BlockSpec((1, out_dim), lambda bi: (bi, 0)),
        compiler_params=pltpu.CompilerParams(
            dimension_semantics=("parallel",),
            vmem_limit_bytes=VMEM_LIMIT),
    )(ph, wc, bc, wl, bl)


def gradual_style_block(x_nchw, params, out_c):
    """Forward pass matching GradualStyleBlock.forward (NCHW input)."""
    x = jnp.transpose(x_nchw, (0, 2, 3, 1)).astype(jnp.bfloat16)   # NCHW -> NHWC, bf16
    convs = params["convs"]
    for (w, b) in convs[:-1]:
        x = conv3x3_s2_lrelu(x, w, b)
    # final conv collapses spatial to 1x1; fuse it with the EqualLinear
    return conv_last_plus_linear(x, convs[-1][0], convs[-1][1],
                                 params["lin_w"], params["lin_b"], lr_mul=1.0)


# ---------------------------------------------------------------------------
# Deterministic synthetic parameters (shapes from GradualStyleBlock.__init__)
# ---------------------------------------------------------------------------
def init_params(key, in_c, out_c, spatial):
    num_pools = int(np.log2(spatial))
    convs = []
    cin = in_c
    for _ in range(num_pools):
        key, k1, k2 = jax.random.split(key, 3)
        w = jax.random.normal(k1, (3, 3, cin, out_c), jnp.float32) / math.sqrt(9 * cin)
        b = jax.random.normal(k2, (out_c,), jnp.float32) * 0.1
        convs.append((w, b))
        cin = out_c
    key, k3 = jax.random.split(key)
    lin_w = jax.random.normal(k3, (out_c, out_c), jnp.float32)   # randn / lr_mul
    lin_b = jnp.zeros((out_c,), jnp.float32)
    return {"convs": convs, "lin_w": lin_w, "lin_b": lin_b}


# ---------------------------------------------------------------------------
# Pure-JAX f32 reference (matches the PyTorch module semantics)
# ---------------------------------------------------------------------------
def ref_forward(x_nchw, params, out_c):
    x = x_nchw
    for (w, b) in params["convs"]:
        w_oihw = jnp.transpose(w, (3, 2, 0, 1))
        x = jax.lax.conv_general_dilated(
            x, w_oihw, window_strides=(2, 2), padding=((1, 1), (1, 1)),
            dimension_numbers=("NCHW", "OIHW", "NCHW"))
        x = x + b.reshape(1, -1, 1, 1)
        x = jnp.where(x >= 0, x, NEG_SLOPE * x)
    x = x.reshape(-1, out_c)
    scale = 1.0 / math.sqrt(params["lin_w"].shape[1])
    return x @ (params["lin_w"] * scale).T + params["lin_b"]


if __name__ == "__main__":
    # Small but MXU/lane-friendly shapes (production pSp uses 512 channels).
    B, in_c, out_c, spatial = 2, 128, 128, 16
    key = jax.random.PRNGKey(0)
    kx, kp = jax.random.split(key)
    x = jax.random.normal(kx, (B, in_c, spatial, spatial), jnp.float32)
    params = init_params(kp, in_c, out_c, spatial)

    out = jax.block_until_ready(gradual_style_block(x, params, out_c))
    assert out.shape == (B, out_c), out.shape

    ref = jax.block_until_ready(ref_forward(x, params, out_c))
    # bf16 operands + f32 accumulation vs an all-f32 reference => loose tolerance.
    rel = float(jnp.linalg.norm(out - ref) / (jnp.linalg.norm(ref) + 1e-12))
    assert rel < 3e-2, f"relative error too large: {rel}"

    print("KERNEL_OK")
</pallas_src>

<mosaic_0001>
module attributes {stable_mosaic.version = 11 : i64} {
  func.func @_conv_lrelu_kernel(%arg0: i32, %arg1: memref<4x9x9x128xbf16, #tpu.memory_space<vmem>>, %arg2: memref<1152x128xbf16, #tpu.memory_space<vmem>>, %arg3: memref<1x128xf32, #tpu.memory_space<vmem>>, %arg4: memref<1x64x128xbf16, #tpu.memory_space<vmem>>) attributes {dimension_semantics = [#tpu.dimension_semantics<parallel>], iteration_bounds = array<i64: 2>, scalar_prefetch = 0 : i64, scratch_operands = 0 : i64, tpu.core_type = #tpu.core_type<tc>, window_params = [{transform_indices = @transform_0, window_bounds = array<i64: 4, 9, 9, 128>}, {pipeline_mode = #tpu.pipeline_mode<synchronous>, transform_indices = @transform_1, window_bounds = array<i64: 1152, 128>}, {pipeline_mode = #tpu.pipeline_mode<synchronous>, transform_indices = @transform_2, window_bounds = array<i64: 1, 128>}, {transform_indices = @transform_3, window_bounds = array<i64: 1, 64, 128>}]} {
    %c0 = arith.constant 0 : index
    %c0_0 = arith.constant 0 : index
    %c0_1 = arith.constant 0 : index
    %c0_2 = arith.constant 0 : index
    %0 = vector.load %arg1[%c0, %c0_0, %c0_1, %c0_2] : memref<4x9x9x128xbf16, #tpu.memory_space<vmem>>, vector<1x9x9x128xbf16>
    %1 = vector.shape_cast %0 : vector<1x9x9x128xbf16> to vector<9x9x128xbf16>
    %c1 = arith.constant 1 : index
    %c0_3 = arith.constant 0 : index
    %c0_4 = arith.constant 0 : index
    %c0_5 = arith.constant 0 : index
    %2 = vector.load %arg1[%c1, %c0_3, %c0_4, %c0_5] : memref<4x9x9x128xbf16, #tpu.memory_space<vmem>>, vector<1x9x9x128xbf16>
    %3 = vector.shape_cast %2 : vector<1x9x9x128xbf16> to vector<9x9x128xbf16>
    %c2 = arith.constant 2 : index
    %c0_6 = arith.constant 0 : index
    %c0_7 = arith.constant 0 : index
    %c0_8 = arith.constant 0 : index
    %4 = vector.load %arg1[%c2, %c0_6, %c0_7, %c0_8] : memref<4x9x9x128xbf16, #tpu.memory_space<vmem>>, vector<1x9x9x128xbf16>
    %5 = vector.shape_cast %4 : vector<1x9x9x128xbf16> to vector<9x9x128xbf16>
    %c3 = arith.constant 3 : index
    %c0_9 = arith.constant 0 : index
    %c0_10 = arith.constant 0 : index
    %c0_11 = arith.constant 0 : index
    %6 = vector.load %arg1[%c3, %c0_9, %c0_10, %c0_11] : memref<4x9x9x128xbf16, #tpu.memory_space<vmem>>, vector<1x9x9x128xbf16>
    %7 = vector.shape_cast %6 : vector<1x9x9x128xbf16> to vector<9x9x128xbf16>
    %8 = vector.extract_strided_slice %1 {offsets = [0, 0, 0], sizes = [8, 8, 128], strides = [1, 1, 1]} : vector<9x9x128xbf16> to vector<8x8x128xbf16>
    %9 = vector.extract_strided_slice %3 {offsets = [0, 0, 0], sizes = [8, 8, 128], strides = [1, 1, 1]} : vector<9x9x128xbf16> to vector<8x8x128xbf16>
    %10 = vector.extract_strided_slice %1 {offsets = [0, 1, 0], sizes = [8, 8, 128], strides = [1, 1, 1]} : vector<9x9x128xbf16> to vector<8x8x128xbf16>
    %11 = vector.extract_strided_slice %5 {offsets = [0, 0, 0], sizes = [8, 8, 128], strides = [1, 1, 1]} : vector<9x9x128xbf16> to vector<8x8x128xbf16>
    %12 = vector.extract_strided_slice %7 {offsets = [0, 0, 0], sizes = [8, 8, 128], strides = [1, 1, 1]} : vector<9x9x128xbf16> to vector<8x8x128xbf16>
    %13 = vector.extract_strided_slice %5 {offsets = [0, 1, 0], sizes = [8, 8, 128], strides = [1, 1, 1]} : vector<9x9x128xbf16> to vector<8x8x128xbf16>
    %14 = vector.extract_strided_slice %1 {offsets = [1, 0, 0], sizes = [8, 8, 128], strides = [1, 1, 1]} : vector<9x9x128xbf16> to vector<8x8x128xbf16>
    %15 = vector.extract_strided_slice %3 {offsets = [1, 0, 0], sizes = [8, 8, 128], strides = [1, 1, 1]} : vector<9x9x128xbf16> to vector<8x8x128xbf16>
    %16 = vector.extract_strided_slice %1 {offsets = [1, 1, 0], sizes = [8, 8, 128], strides = [1, 1, 1]} : vector<9x9x128xbf16> to vector<8x8x128xbf16>
    %17 = tpu.concatenate %8, %9, %10, %11, %12, %13, %14, %15, %16 in 2 : vector<8x8x128xbf16>, vector<8x8x128xbf16>, vector<8x8x128xbf16>, vector<8x8x128xbf16>, vector<8x8x128xbf16>, vector<8x8x128xbf16>, vector<8x8x128xbf16>, vector<8x8x128xbf16>, vector<8x8x128xbf16> -> vector<8x8x1152xbf16>
    %18 = vector.shape_cast %17 : vector<8x8x1152xbf16> to vector<64x1152xbf16>
    %c0_12 = arith.constant 0 : index
    %c0_13 = arith.constant 0 : index
    %19 = vector.load %arg2[%c0_12, %c0_13] : memref<1152x128xbf16, #tpu.memory_space<vmem>>, vector<1152x128xbf16>
    %cst = arith.constant dense<0.000000e+00> : vector<64x128xf32>
    %20 = tpu.matmul %18, %19, %cst {dimension_numbers = #tpu.dot_dimension_numbers<[1], [0], [0], [1], [0, 0, 1, 1], [], []>} : vector<64x1152xbf16>, vector<1152x128xbf16>, vector<64x128xf32> -> vector<64x128xf32>
    %c0_14 = arith.constant 0 : index
    %c0_15 = arith.constant 0 : index
    %21 = vector.load %arg3[%c0_14, %c0_15] : memref<1x128xf32, #tpu.memory_space<vmem>>, vector<1x128xf32>
    %22 = vector.broadcast %21 : vector<1x128xf32> to vector<64x128xf32>
    %23 = arith.addf %20, %22 : vector<64x128xf32>
    %cst_16 = arith.constant 0.000000e+00 : f32
    %24 = vector.broadcast %cst_16 : f32 to vector<64x128xf32>
    %25 = arith.cmpf oge, %23, %24 : vector<64x128xf32>
    %cst_17 = arith.constant 0.00999999977 : f32
    %26 = vector.broadcast %cst_17 : f32 to vector<64x128xf32>
    %27 = arith.mulf %26, %23 : vector<64x128xf32>
    %28 = arith.select %25, %23, %27 : vector<64x128xi1>, vector<64x128xf32>
    %29 = arith.truncf %28 : vector<64x128xf32> to vector<64x128xbf16>
    %c0_18 = arith.constant 0 : index
    %c0_19 = arith.constant 0 : index
    %c0_20 = arith.constant 0 : index
    %30 = vector.load %arg4[%c0_18, %c0_19, %c0_20] : memref<1x64x128xbf16, #tpu.memory_space<vmem>>, vector<1x64x128xbf16>
    %31 = vector.shape_cast %30 : vector<1x64x128xbf16> to vector<64x128xbf16>
    %32 = vector.shape_cast %29 : vector<64x128xbf16> to vector<1x64x128xbf16>
    tpu.vector_store %arg4[%c0_18, %c0_19, %c0_20], %32 {strides = array<i32>} : memref<1x64x128xbf16, #tpu.memory_space<vmem>>, vector<1x64x128xbf16>,
    return
  }
  func.func @transform_0(%arg0: i32) -> (i32, i32, i32, i32) {
    %c0_i32 = arith.constant 0 : i32
    %c0_i32_0 = arith.constant 0 : i32
    %c0_i32_1 = arith.constant 0 : i32
    %c0_i32_2 = arith.constant 0 : i32
    return %arg0, %c0_i32, %c0_i32_0, %c0_i32_1 : i32, i32, i32, i32
  }
  func.func @transform_1(%arg0: i32) -> (i32, i32) {
    %c0_i32 = arith.constant 0 : i32
    %c0_i32_0 = arith.constant 0 : i32
    %c0_i32_1 = arith.constant 0 : i32
    return %c0_i32, %c0_i32_0 : i32, i32
  }
  func.func @transform_2(%arg0: i32) -> (i32, i32) {
    %c0_i32 = arith.constant 0 : i32
    %c0_i32_0 = arith.constant 0 : i32
    %c0_i32_1 = arith.constant 0 : i32
    return %c0_i32, %c0_i32_0 : i32, i32
  }
  func.func @transform_3(%arg0: i32) -> (i32, i32, i32) {
    %c0_i32 = arith.constant 0 : i32
    %c0_i32_0 = arith.constant 0 : i32
    %c0_i32_1 = arith.constant 0 : i32
    return %arg0, %c0_i32, %c0_i32_0 : i32, i32, i32
  }
}

</mosaic_0001>

<llo_original>
// kernel: tpu_custom_call.1
$region0: #{tpu_custom_call.1}
  #allocation0 [shape = 'u32[]', space=smem, size = 0x4, offset = 0x4, fixed_abs, tag = 'smem constant byte address 0x4 - core index']
  #allocation1 [shape = 'u32[72,128]{1,0:T(1,128)}', space=vmem, size = 0x9000, scoped, tag = 'internal scratch']
  %s0 = inlined_call_operand.vmem [shape: bf16[8,9,9,128], index: 0, kind: input, shape index: {}]
  %s1 = inlined_call_operand.vmem [shape: bf16[1152,128], index: 1, kind: input, shape index: {}]
  %s2 = inlined_call_operand.vmem [shape: f32[1,128], index: 2, kind: input, shape index: {}]
  %s3 = inlined_call_operand.hbm [shape: bf16[2,64,128], index: 3, kind: output, shape index: {}]
  %s4 = sld [smem:[#allocation0]]
  $region45: #{tpu_custom_call.1} parent=0
    _
  %s6 = ssub.s32 1, %s4
  %s7 = scalar_select 0, %s6, %s4
  $region1: #{tpu_custom_call.1} parent=0
    #allocation2 [shape = 'u8[32768]{0}', space=vmem, size = 0x8000, scoped, tag = 'output window, operand 0']
    #allocation3 [shape = 's32[2]{0}', space=sflag, size = 0x8, scoped, tag = 'scoped memory for tpu_custom_call.1']
    %8 = vsyncpa [#allocation3], 0
    %s9 = scalar_lea.sflag [#allocation3], 1
    %10 = vsyncpa %s9, 0
    loop: start=0, step=1, limit=4
    $region2: #{tpu_custom_call.1} parent=1 // loop_pre_header
      _
    $region3: #{tpu_custom_call.1} parent=1 // loop_header
      %s12 = sphi 0, %s16
      %p13 = scmp.ge.s32.totalorder %s12, 4
      %s22 = sphi 0, %s24
      %s25 = sphi 0, %s22
      %s26 = sphi 0, %s25
      %s42 = sphi 0, %s26
      %s46 = sphi 0, %s46
      %s48 = sphi 0, %s46
      %s49 = sphi 0, %s48
      %s63 = sphi 0, %s49
      %s67 = sphi 0, %s67
      %s69 = sphi 0, %s67
      %s70 = sphi 0, %s69
      %s84 = sphi 0, %s70
      %s90 = sphi 0, %s92
      %s93 = sphi 0, %s90
      %s94 = sphi 0, %s93
      %s110 = sphi 0, %s94
    $region4: #{tpu_custom_call.1} parent=1 // loop_header_branch
      %15 = sbr.rel (%p13) target = $region8
    $region5: #{tpu_custom_call.1} parent=1 // loop_body
      %s17 = ssub.s32 %s12, 1
      %s18 = ssub.s32 %s12, 2
      %s19 = sadd.s32 %s12, 1
      %s20 = ssub.s32 %s12, %s19
      %p21 = scmp.eq.s32.totalorder %s20, 0
      %s23 = sadd.s32 %s22, 1
      %s24 = scalar_select %p21, %s22, %s23
      %p27 = pneg %p21
      %p28 = scmp.eq.s32.totalorder %s12, 1
      %p29 = por %p27, %p28
      %p30 = scmp.ne.s32.totalorder %s22, %s25
      %p31 = scmp.eq.s32.totalorder %s12, 0
      %p32 = por %p30, %p31
      %p33 = scmp.ne.s32.totalorder %s22, %s25
      %p34 = scmp.eq.s32.totalorder %s17, 1
      %p35 = por %p33, %p34
      %p36 = scmp.ne.s32.totalorder %s25, %s26
      %p37 = scmp.eq.s32.totalorder %s17, 0
      %p38 = por %p36, %p37
      %p39 = scmp.ne.s32.totalorder %s25, %s26
      %p40 = scmp.eq.s32.totalorder %s18, 1
      %p41 = por %p39, %p40
      %p43 = scmp.ne.s32.totalorder %s26, %s42
      %p44 = scmp.eq.s32.totalorder %s18, 0
      %p45 = por %p43, %p44
      %s47 = sadd.s32 %s46, 1
      %p50 = scmp.eq.s32.totalorder %s12, 1
      %p51 = scmp.ne.s32.totalorder %s46, %s48
      %p52 = scmp.eq.s32.totalorder %s12, 0
      %p53 = por %p51, %p52
      %p54 = scmp.ne.s32.totalorder %s46, %s48
      %p55 = scmp.eq.s32.totalorder %s17, 1
      %p56 = por %p54, %p55
      %p57 = scmp.ne.s32.totalorder %s48, %s49
      %p58 = scmp.eq.s32.totalorder %s17, 0
      %p59 = por %p57, %p58
      %p60 = scmp.ne.s32.totalorder %s48, %s49
      %p61 = scmp.eq.s32.totalorder %s18, 1
      %p62 = por %p60, %p61
      %p64 = scmp.ne.s32.totalorder %s49, %s63
      %p65 = scmp.eq.s32.totalorder %s18, 0
      %p66 = por %p64, %p65
      %s68 = sadd.s32 %s67, 1
      %p71 = scmp.eq.s32.totalorder %s12, 1
      %p72 = scmp.ne.s32.totalorder %s67, %s69
      %p73 = scmp.eq.s32.totalorder %s12, 0
      %p74 = por %p72, %p73
      %p75 = scmp.ne.s32.totalorder %s67, %s69
      %p76 = scmp.eq.s32.totalorder %s17, 1
      %p77 = por %p75, %p76
      %p78 = scmp.ne.s32.totalorder %s69, %s70
      %p79 = scmp.eq.s32.totalorder %s17, 0
      %p80 = por %p78, %p79
      %p81 = scmp.ne.s32.totalorder %s69, %s70
      %p82 = scmp.eq.s32.totalorder %s18, 1
      %p83 = por %p81, %p82
      %p85 = scmp.ne.s32.totalorder %s70, %s84
      %p86 = scmp.eq.s32.totalorder %s18, 0
      %p87 = por %p85, %p86
      %s88 = ssub.s32 %s12, %s19
      %p89 = scmp.eq.s32.totalorder %s88, 0
      %s91 = sadd.s32 %s90, 1
      %s92 = scalar_select %p89, %s90, %s91
      %p95 = pneg %p89
      %p96 = scmp.eq.s32.totalorder %s12, 1
      %p97 = por %p95, %p96
      %p98 = scmp.ne.s32.totalorder %s90, %s93
      %p99 = scmp.eq.s32.totalorder %s12, 0
      %p100 = por %p98, %p99
      %p101 = scmp.ne.s32.totalorder %s90, %s93
      %p102 = scmp.eq.s32.totalorder %s17, 1
      %p103 = por %p101, %p102
      %p104 = scmp.ne.s32.totalorder %s93, %s94
      %p105 = scmp.eq.s32.totalorder %s17, 0
      %p106 = por %p104, %p105
      %p107 = scmp.ne.s32.totalorder %s93, %s94
      %p108 = scmp.eq.s32.totalorder %s18, 1
      %p109 = por %p107, %p108
      %p111 = scmp.ne.s32.totalorder %s94, %s110
      %p112 = scmp.eq.s32.totalorder %s18, 0
      %p113 = por %p111, %p112
      %p114 = scmp.le.s32.totalorder 1, %s12
      %p115 = scmp.lt.s32.totalorder %s12, 3
      %p116 = pnand %p114, %p115
      %p117 = pneg %p116
      // Predicated region
      $region9: #{tpu_custom_call.1} parent=5 // pred_check
        _
      $region10: #{tpu_custom_call.1} parent=5 // pred_check_branch
        %119 = sbr.rel (%p116) target = $region12
      $region11: #{tpu_custom_call.1} parent=5 // pred_region
        %s120 = ssub.s32 %s12, 1
        // Predicated region
        $region13: #{tpu_custom_call.1} parent=11 // pred_check
          %p121 = pneg %p59
        $region14: #{tpu_custom_call.1} parent=11 // pred_check_branch
          %123 = sbr.rel (%p121) target = $region16
        $region15: #{tpu_custom_call.1} parent=11 // pred_region
          _
        $region16: #{tpu_custom_call.1} parent=11 // pred_fallthru
          _
        // Predicated region
        $region17: #{tpu_custom_call.1} parent=11 // pred_check
          %p124 = pneg %p80
        $region18: #{tpu_custom_call.1} parent=11 // pred_check_branch
          %126 = sbr.rel (%p124) target = $region20
        $region19: #{tpu_custom_call.1} parent=11 // pred_region
          _
        $region20: #{tpu_custom_call.1} parent=11 // pred_fallthru
          _
      $region12: #{tpu_custom_call.1} parent=5 // pred_fallthru
        _
      %p127 = scmp.lt.s32.totalorder %s12, 2
      // Predicated region
      $region21: #{tpu_custom_call.1} parent=5 // pred_check
        %p128 = pneg %p127
      $region22: #{tpu_custom_call.1} parent=5 // pred_check_branch
        %130 = sbr.rel (%p128) target = $region24
      $region23: #{tpu_custom_call.1} parent=5 // pred_region
        // Predicated region
        $region25: #{tpu_custom_call.1} parent=23 // pred_check
          %p131 = pneg %p32
        $region26: #{tpu_custom_call.1} parent=23 // pred_check_branch
          %133 = sbr.rel (%p131) target = $region28
        $region27: #{tpu_custom_call.1} parent=23 // pred_region
          %s134 = smul.u32 4, %s12
          %p135 = scmp.lt.s32.totalorder %s134, 7
          %s136 = scalar_select %p135, %s134, 7
          %s137 = smul.addr %s136, 18
          %s138 = smul.addr %s137, 4
          %s139 = scalar_lea.vmem %s0, %s138
          %s140 = smul.u32 4, %s12
        $region28: #{tpu_custom_call.1} parent=23 // pred_fallthru
          _
      $region24: #{tpu_custom_call.1} parent=5 // pred_fallthru
        _
      %p141 = scmp.le.s32.totalorder 1, %s12
      %p142 = scmp.lt.s32.totalorder %s12, 3
      %p143 = pnand %p141, %p142
      %p144 = pneg %p143
      // Predicated region
      $region29: #{tpu_custom_call.1} parent=5 // pred_check
        _
      $region30: #{tpu_custom_call.1} parent=5 // pred_check_branch
        %146 = sbr.rel (%p143) target = $region32
      $region31: #{tpu_custom_call.1} parent=5 // pred_region
        %s147 = ssub.s32 %s12, 1
        %s148 = smul.u32 4, %s17
        %p149 = scmp.lt.s32.totalorder %s148, 7
        %s150 = scalar_select %p149, %s148, 7
        %s151 = smul.addr %s150, 18
        %s152 = smul.addr %s151, 4
        %s153 = scalar_lea.vmem %s0, %s152
        %p154 = pneg %p38
        %p155 = pneg %p35
        %p156 = pneg %p59
        %p157 = pneg %p56
        %p158 = pneg %p80
        %p159 = pneg %p77
        %p160 = pneg %p106
        %p161 = pneg %p103
        %s162 = sand.u32 %s93, 1
        %s163 = scalar_lea.sflag [#allocation3], %s162
        %s164 = sand.u32 %s93, 1
        %s165 = smul.addr %s164, 32
        %s166 = scalar_lea.vmem [#allocation2], %s165
        %s167 = smul.u32 4, %s17
        %p168 = scmp.lt.s32.totalorder %s167, 7
        %s169 = scalar_select %p168, %s167, 7
        %s170 = smul.addr %s169, 18
        %s171 = smul.addr %s170, 4
        %s172 = scalar_lea.vmem %s0, %s171
        %s173 = smul.u32 4, %s17
        %v174 = vld [vmem:[%s172] sm:$0xf]
        %v175 = vld [vmem:[%s172 + $0x4] sm:$0x1]
        %v176 = vld [vmem:[%s172 + $0x8] sm:$0xf]
        %v177 = vld [vmem:[%s172 + $0xc] sm:$0x1]
        %v178 = vld [vmem:[%s172 + $0x10] sm:$0xf]
        %v179 = vld [vmem:[%s172 + $0x14] sm:$0x1]
        %v180 = vld [vmem:[%s172 + $0x18] sm:$0xf]
        %v181 = vld [vmem:[%s172 + $0x1c] sm:$0x1]
        %v182 = vld [vmem:[%s172 + $0x20] sm:$0xf]
        %v183 = vld [vmem:[%s172 + $0x24] sm:$0x1]
        %v184 = vld [vmem:[%s172 + $0x28] sm:$0xf]
        %v185 = vld [vmem:[%s172 + $0x2c] sm:$0x1]
        %v186 = vld [vmem:[%s172 + $0x30] sm:$0xf]
        %v187 = vld [vmem:[%s172 + $0x34] sm:$0x1]
        %v188 = vld [vmem:[%s172 + $0x38] sm:$0xf]
        %v189 = vld [vmem:[%s172 + $0x3c] sm:$0x1]
        %v190 = vld [vmem:[%s172 + $0x40] sm:$0xf]
        %v191 = vld [vmem:[%s172 + $0x44] sm:$0x1]
        %s192 = scalar_lea.vmem %s172, 72
        %v193 = vld [vmem:[%s192] sm:$0xf]
        %v194 = vld [vmem:[%s192 + $0x8] sm:$0xf]
        %v195 = vld [vmem:[%s192 + $0x10] sm:$0xf]
        %v196 = vld [vmem:[%s192 + $0x18] sm:$0xf]
        %v197 = vld [vmem:[%s192 + $0x20] sm:$0xf]
        %v198 = vld [vmem:[%s192 + $0x28] sm:$0xf]
        %v199 = vld [vmem:[%s192 + $0x30] sm:$0xf]
        %v200 = vld [vmem:[%s192 + $0x38] sm:$0xf]
        %v201 = vld [vmem:[%s192 + $0x40] sm:$0xf]
        %s202 = scalar_lea.vmem %s172, 144
        %v203 = vld [vmem:[%s202] sm:$0xf]
        %v204 = vld [vmem:[%s202 + $0x4] sm:$0x1]
        %v205 = vld [vmem:[%s202 + $0x8] sm:$0xf]
        %v206 = vld [vmem:[%s202 + $0xc] sm:$0x1]
        %v207 = vld [vmem:[%s202 + $0x10] sm:$0xf]
        %v208 = vld [vmem:[%s202 + $0x14] sm:$0x1]
        %v209 = vld [vmem:[%s202 + $0x18] sm:$0xf]
        %v210 = vld [vmem:[%s202 + $0x1c] sm:$0x1]
        %v211 = vld [vmem:[%s202 + $0x20] sm:$0xf]
        %v212 = vld [vmem:[%s202 + $0x24] sm:$0x1]
        %v213 = vld [vmem:[%s202 + $0x28] sm:$0xf]
        %v214 = vld [vmem:[%s202 + $0x2c] sm:$0x1]
        %v215 = vld [vmem:[%s202 + $0x30] sm:$0xf]
        %v216 = vld [vmem:[%s202 + $0x34] sm:$0x1]
        %v217 = vld [vmem:[%s202 + $0x38] sm:$0xf]
        %v218 = vld [vmem:[%s202 + $0x3c] sm:$0x1]
        %s219 = scalar_lea.vmem %s172, 216
        %v220 = vld [vmem:[%s219] sm:$0xf]
        %v221 = vld [vmem:[%s219 + $0x8] sm:$0xf]
        %v222 = vld [vmem:[%s219 + $0x10] sm:$0xf]
        %v223 = vld [vmem:[%s219 + $0x18] sm:$0xf]
        %v224 = vld [vmem:[%s219 + $0x20] sm:$0xf]
        %v225 = vld [vmem:[%s219 + $0x28] sm:$0xf]
        %v226 = vld [vmem:[%s219 + $0x30] sm:$0xf]
        %v227 = vld [vmem:[%s219 + $0x38] sm:$0xf]
        %v244 = vunpack.c.l.b16 %v174
        %v245 = vunpack.c.l.b16 %v175
        %v246 = vunpack.c.l.b16 %v176
        %v247 = vunpack.c.l.b16 %v177
        %v248 = vunpack.c.l.b16 %v178
        %v249 = vunpack.c.l.b16 %v179
        %v250 = vunpack.c.l.b16 %v180
        %v251 = vunpack.c.l.b16 %v181
        %v252 = vunpack.c.l.b16 %v182
        %v253 = vunpack.c.l.b16 %v183
        %v254 = vunpack.c.l.b16 %v184
        %v255 = vunpack.c.l.b16 %v185
        %v256 = vunpack.c.l.b16 %v186
        %v257 = vunpack.c.l.b16 %v187
        %v258 = vunpack.c.l.b16 %v188
        %v259 = vunpack.c.l.b16 %v189
        %v260 = vpack.c.b16 %v245, %v244
        %v261 = vpack.c.b16 %v247, %v246
        %v262 = vpack.c.b16 %v249, %v248
        %v263 = vpack.c.b16 %v251, %v250
        %v264 = vpack.c.b16 %v253, %v252
        %v265 = vpack.c.b16 %v255, %v254
        %v266 = vpack.c.b16 %v257, %v256
        %v267 = vpack.c.b16 %v259, %v258
        %v269 = vshrl.u32 %v260, 16
        %v271 = vshll.u32 %v260, 16
        %v273 = vrot.slane %v271, 1
        %v274 = vor.u32 %v269, %v273
        %v276 = vshrl.u32 %v261, 16
        %v278 = vshll.u32 %v261, 16
        %v280 = vrot.slane %v278, 1
        %v281 = vor.u32 %v276, %v280
        %v283 = vshrl.u32 %v262, 16
        %v285 = vshll.u32 %v262, 16
        %v287 = vrot.slane %v285, 1
        %v288 = vor.u32 %v283, %v287
        %v290 = vshrl.u32 %v263, 16
        %v292 = vshll.u32 %v263, 16
        %v294 = vrot.slane %v292, 1
        %v295 = vor.u32 %v290, %v294
        %v297 = vshrl.u32 %v264, 16
        %v299 = vshll.u32 %v264, 16
        %v301 = vrot.slane %v299, 1
        %v302 = vor.u32 %v297, %v301
        %v304 = vshrl.u32 %v265, 16
        %v306 = vshll.u32 %v265, 16
        %v308 = vrot.slane %v306, 1
        %v309 = vor.u32 %v304, %v308
        %v311 = vshrl.u32 %v266, 16
        %v313 = vshll.u32 %v266, 16
        %v315 = vrot.slane %v313, 1
        %v316 = vor.u32 %v311, %v315
        %v318 = vshrl.u32 %v267, 16
        %v320 = vshll.u32 %v267, 16
        %v322 = vrot.slane %v320, 1
        %v323 = vor.u32 %v318, %v322
        %v340 = vunpack.c.l.b16 %v203
        %v341 = vunpack.c.l.b16 %v204
        %v342 = vunpack.c.l.b16 %v205
        %v343 = vunpack.c.l.b16 %v206
        %v344 = vunpack.c.l.b16 %v207
        %v345 = vunpack.c.l.b16 %v208
        %v346 = vunpack.c.l.b16 %v209
        %v347 = vunpack.c.l.b16 %v210
        %v348 = vunpack.c.l.b16 %v211
        %v349 = vunpack.c.l.b16 %v212
        %v350 = vunpack.c.l.b16 %v213
        %v351 = vunpack.c.l.b16 %v214
        %v352 = vunpack.c.l.b16 %v215
        %v353 = vunpack.c.l.b16 %v216
        %v354 = vunpack.c.l.b16 %v217
        %v355 = vunpack.c.l.b16 %v218
        %v356 = vpack.c.b16 %v341, %v340
        %v357 = vpack.c.b16 %v343, %v342
        %v358 = vpack.c.b16 %v345, %v344
        %v359 = vpack.c.b16 %v347, %v346
        %v360 = vpack.c.b16 %v349, %v348
        %v361 = vpack.c.b16 %v351, %v350
        %v362 = vpack.c.b16 %v353, %v352
        %v363 = vpack.c.b16 %v355, %v354
        %v365 = vshrl.u32 %v356, 16
        %v367 = vshll.u32 %v356, 16
        %v369 = vrot.slane %v367, 1
        %v370 = vor.u32 %v365, %v369
        %v372 = vshrl.u32 %v357, 16
        %v374 = vshll.u32 %v357, 16
        %v376 = vrot.slane %v374, 1
        %v377 = vor.u32 %v372, %v376
        %v379 = vshrl.u32 %v358, 16
        %v381 = vshll.u32 %v358, 16
        %v383 = vrot.slane %v381, 1
        %v384 = vor.u32 %v379, %v383
        %v386 = vshrl.u32 %v359, 16
        %v388 = vshll.u32 %v359, 16
        %v390 = vrot.slane %v388, 1
        %v391 = vor.u32 %v386, %v390
        %v393 = vshrl.u32 %v360, 16
        %v395 = vshll.u32 %v360, 16
        %v397 = vrot.slane %v395, 1
        %v398 = vor.u32 %v393, %v397
        %v400 = vshrl.u32 %v361, 16
        %v402 = vshll.u32 %v361, 16
        %v404 = vrot.slane %v402, 1
        %v405 = vor.u32 %v400, %v404
        %v407 = vshrl.u32 %v362, 16
        %v409 = vshll.u32 %v362, 16
        %v411 = vrot.slane %v409, 1
        %v412 = vor.u32 %v407, %v411
        %v414 = vshrl.u32 %v363, 16
        %v416 = vshll.u32 %v363, 16
        %v418 = vrot.slane %v416, 1
        %v419 = vor.u32 %v414, %v418
        %v422 = vunpack.c.l.b16 %v190
        %v423 = vunpack.c.l.b16 %v191
        %v424 = vpack.c.b16 %v423, %v422
        %v426 = vshrl.u32 %v424, 16
        %v428 = vshll.u32 %v424, 16
        %v430 = vrot.slane %v428, 1
        %v431 = vor.u32 %v426, %v430
        %v449 = vunpack.c.l.b16 %v193
        %v450 = vunpack.c.l.b16 %v274
        %v451 = vunpack.c.l.b16 %v220
        %v452 = vunpack.c.l.b16 %v370
        %v453 = vunpack.c.l.b16 %v194
        %v454 = vunpack.c.l.b16 %v281
        %v455 = vunpack.c.l.b16 %v221
        %v456 = vunpack.c.l.b16 %v377
        %v457 = vunpack.c.l.b16 %v195
        %v458 = vunpack.c.l.b16 %v288
        %v459 = vunpack.c.l.b16 %v222
        %v460 = vunpack.c.l.b16 %v384
        %v461 = vunpack.c.l.b16 %v196
        %v462 = vunpack.c.l.b16 %v295
        %v463 = vunpack.c.l.b16 %v223
        %v464 = vunpack.c.l.b16 %v391
        %v465 = vunpack.c.l.b16 %v197
        %v466 = vunpack.c.l.b16 %v302
        %v467 = vunpack.c.l.b16 %v224
        %v468 = vunpack.c.l.b16 %v398
        %v469 = vunpack.c.l.b16 %v198
        %v470 = vunpack.c.l.b16 %v309
        %v471 = vunpack.c.l.b16 %v225
        %v472 = vunpack.c.l.b16 %v405
        %v473 = vunpack.c.l.b16 %v199
        %v474 = vunpack.c.l.b16 %v316
        %v475 = vunpack.c.l.b16 %v226
        %v476 = vunpack.c.l.b16 %v412
        %v477 = vunpack.c.l.b16 %v200
        %v478 = vunpack.c.l.b16 %v323
        %v479 = vunpack.c.l.b16 %v227
        %v480 = vunpack.c.l.b16 %v419
        %v481 = vunpack.c.l.b16 %v201
        %v482 = vunpack.c.l.b16 %v431
        %v483 = vld [vmem:[%s1] sm:$0xf]
        %v484 = vld [vmem:[%s1 + $0x4] sm:$0xf]
        %v485 = vld [vmem:[%s1 + $0x8] sm:$0xf]
        %v486 = vld [vmem:[%s1 + $0xc] sm:$0xf]
        %v487 = vld [vmem:[%s1 + $0x10] sm:$0xf]
        %v488 = vld [vmem:[%s1 + $0x14] sm:$0xf]
        %v489 = vld [vmem:[%s1 + $0x18] sm:$0xf]
        %v490 = vld [vmem:[%s1 + $0x1c] sm:$0xf]
        %v491 = vld [vmem:[%s1 + $0x20] sm:$0xf]
        %v492 = vld [vmem:[%s1 + $0x24] sm:$0xf]
        %v493 = vld [vmem:[%s1 + $0x28] sm:$0xf]
        %v494 = vld [vmem:[%s1 + $0x2c] sm:$0xf]
        %v495 = vld [vmem:[%s1 + $0x30] sm:$0xf]
        %v496 = vld [vmem:[%s1 + $0x34] sm:$0xf]
        %v497 = vld [vmem:[%s1 + $0x38] sm:$0xf]
        %v498 = vld [vmem:[%s1 + $0x3c] sm:$0xf]
        %v499 = vld [vmem:[%s1 + $0x40] sm:$0xf]
        %v500 = vld [vmem:[%s1 + $0x44] sm:$0xf]
        %v501 = vld [vmem:[%s1 + $0x48] sm:$0xf]
        %v502 = vld [vmem:[%s1 + $0x4c] sm:$0xf]
        %v503 = vld [vmem:[%s1 + $0x50] sm:$0xf]
        %v504 = vld [vmem:[%s1 + $0x54] sm:$0xf]
        %v505 = vld [vmem:[%s1 + $0x58] sm:$0xf]
        %v506 = vld [vmem:[%s1 + $0x5c] sm:$0xf]
        %v507 = vld [vmem:[%s1 + $0x60] sm:$0xf]
        %v508 = vld [vmem:[%s1 + $0x64] sm:$0xf]
        %v509 = vld [vmem:[%s1 + $0x68] sm:$0xf]
        %v510 = vld [vmem:[%s1 + $0x6c] sm:$0xf]
        %v511 = vld [vmem:[%s1 + $0x70] sm:$0xf]
        %v512 = vld [vmem:[%s1 + $0x74] sm:$0xf]
        %v513 = vld [vmem:[%s1 + $0x78] sm:$0xf]
        %v514 = vld [vmem:[%s1 + $0x7c] sm:$0xf]
        %v515 = vld [vmem:[%s1 + $0x80] sm:$0xf]
        %v516 = vld [vmem:[%s1 + $0x84] sm:$0xf]
        %v517 = vld [vmem:[%s1 + $0x88] sm:$0xf]
        %v518 = vld [vmem:[%s1 + $0x8c] sm:$0xf]
        %v519 = vld [vmem:[%s1 + $0x90] sm:$0xf]
        %v520 = vld [vmem:[%s1 + $0x94] sm:$0xf]
        %v521 = vld [vmem:[%s1 + $0x98] sm:$0xf]
        %v522 = vld [vmem:[%s1 + $0x9c] sm:$0xf]
        %v523 = vld [vmem:[%s1 + $0xa0] sm:$0xf]
        %v524 = vld [vmem:[%s1 + $0xa4] sm:$0xf]
        %v525 = vld [vmem:[%s1 + $0xa8] sm:$0xf]
        %v526 = vld [vmem:[%s1 + $0xac] sm:$0xf]
        %v527 = vld [vmem:[%s1 + $0xb0] sm:$0xf]
        %v528 = vld [vmem:[%s1 + $0xb4] sm:$0xf]
        %v529 = vld [vmem:[%s1 + $0xb8] sm:$0xf]
        %v530 = vld [vmem:[%s1 + $0xbc] sm:$0xf]
        %v531 = vld [vmem:[%s1 + $0xc0] sm:$0xf]
        %v532 = vld [vmem:[%s1 + $0xc4] sm:$0xf]
        %v533 = vld [vmem:[%s1 + $0xc8] sm:$0xf]
        %v534 = vld [vmem:[%s1 + $0xcc] sm:$0xf]
        %v535 = vld [vmem:[%s1 + $0xd0] sm:$0xf]
        %v536 = vld [vmem:[%s1 + $0xd4] sm:$0xf]
        %v537 = vld [vmem:[%s1 + $0xd8] sm:$0xf]
        %v538 = vld [vmem:[%s1 + $0xdc] sm:$0xf]
        %v539 = vld [vmem:[%s1 + $0xe0] sm:$0xf]
        %v540 = vld [vmem:[%s1 + $0xe4] sm:$0xf]
        %v541 = vld [vmem:[%s1 + $0xe8] sm:$0xf]
        %v542 = vld [vmem:[%s1 + $0xec] sm:$0xf]
        %v543 = vld [vmem:[%s1 + $0xf0] sm:$0xf]
        %v544 = vld [vmem:[%s1 + $0xf4] sm:$0xf]
        %v545 = vld [vmem:[%s1 + $0xf8] sm:$0xf]
        %v546 = vld [vmem:[%s1 + $0xfc] sm:$0xf]
        %v547 = vld [vmem:[%s1 + $0x100] sm:$0xf]
        %v548 = vld [vmem:[%s1 + $0x104] sm:$0xf]
        %v549 = vld [vmem:[%s1 + $0x108] sm:$0xf]
        %v550 = vld [vmem:[%s1 + $0x10c] sm:$0xf]
        %v551 = vld [vmem:[%s1 + $0x110] sm:$0xf]
        %v552 = vld [vmem:[%s1 + $0x114] sm:$0xf]
        %v553 = vld [vmem:[%s1 + $0x118] sm:$0xf]
        %v554 = vld [vmem:[%s1 + $0x11c] sm:$0xf]
        %v555 = vld [vmem:[%s1 + $0x120] sm:$0xf]
        %v556 = vld [vmem:[%s1 + $0x124] sm:$0xf]
        %v557 = vld [vmem:[%s1 + $0x128] sm:$0xf]
        %v558 = vld [vmem:[%s1 + $0x12c] sm:$0xf]
        %v559 = vld [vmem:[%s1 + $0x130] sm:$0xf]
        %v560 = vld [vmem:[%s1 + $0x134] sm:$0xf]
        %v561 = vld [vmem:[%s1 + $0x138] sm:$0xf]
        %v562 = vld [vmem:[%s1 + $0x13c] sm:$0xf]
        %v563 = vld [vmem:[%s1 + $0x140] sm:$0xf]
        %v564 = vld [vmem:[%s1 + $0x144] sm:$0xf]
        %v565 = vld [vmem:[%s1 + $0x148] sm:$0xf]
        %v566 = vld [vmem:[%s1 + $0x14c] sm:$0xf]
        %v567 = vld [vmem:[%s1 + $0x150] sm:$0xf]
        %v568 = vld [vmem:[%s1 + $0x154] sm:$0xf]
        %v569 = vld [vmem:[%s1 + $0x158] sm:$0xf]
        %v570 = vld [vmem:[%s1 + $0x15c] sm:$0xf]
        %v571 = vld [vmem:[%s1 + $0x160] sm:$0xf]
        %v572 = vld [vmem:[%s1 + $0x164] sm:$0xf]
        %v573 = vld [vmem:[%s1 + $0x168] sm:$0xf]
        %v574 = vld [vmem:[%s1 + $0x16c] sm:$0xf]
        %v575 = vld [vmem:[%s1 + $0x170] sm:$0xf]
        %v576 = vld [vmem:[%s1 + $0x174] sm:$0xf]
        %v577 = vld [vmem:[%s1 + $0x178] sm:$0xf]
        %v578 = vld [vmem:[%s1 + $0x17c] sm:$0xf]
        %v579 = vld [vmem:[%s1 + $0x180] sm:$0xf]
        %v580 = vld [vmem:[%s1 + $0x184] sm:$0xf]
        %v581 = vld [vmem:[%s1 + $0x188] sm:$0xf]
        %v582 = vld [vmem:[%s1 + $0x18c] sm:$0xf]
        %v583 = vld [vmem:[%s1 + $0x190] sm:$0xf]
        %v584 = vld [vmem:[%s1 + $0x194] sm:$0xf]
        %v585 = vld [vmem:[%s1 + $0x198] sm:$0xf]
        %v586 = vld [vmem:[%s1 + $0x19c] sm:$0xf]
        %v587 = vld [vmem:[%s1 + $0x1a0] sm:$0xf]
        %v588 = vld [vmem:[%s1 + $0x1a4] sm:$0xf]
        %v589 = vld [vmem:[%s1 + $0x1a8] sm:$0xf]
        %v590 = vld [vmem:[%s1 + $0x1ac] sm:$0xf]
        %v591 = vld [vmem:[%s1 + $0x1b0] sm:$0xf]
        %v592 = vld [vmem:[%s1 + $0x1b4] sm:$0xf]
        %v593 = vld [vmem:[%s1 + $0x1b8] sm:$0xf]
        %v594 = vld [vmem:[%s1 + $0x1bc] sm:$0xf]
        %v595 = vld [vmem:[%s1 + $0x1c0] sm:$0xf]
        %v596 = vld [vmem:[%s1 + $0x1c4] sm:$0xf]
        %v597 = vld [vmem:[%s1 + $0x1c8] sm:$0xf]
        %v598 = vld [vmem:[%s1 + $0x1cc] sm:$0xf]
        %v599 = vld [vmem:[%s1 + $0x1d0] sm:$0xf]
        %v600 = vld [vmem:[%s1 + $0x1d4] sm:$0xf]
        %v601 = vld [vmem:[%s1 + $0x1d8] sm:$0xf]
        %v602 = vld [vmem:[%s1 + $0x1dc] sm:$0xf]
        %v603 = vld [vmem:[%s1 + $0x1e0] sm:$0xf]
        %v604 = vld [vmem:[%s1 + $0x1e4] sm:$0xf]
        %v605 = vld [vmem:[%s1 + $0x1e8] sm:$0xf]
        %v606 = vld [vmem:[%s1 + $0x1ec] sm:$0xf]
        %v607 = vld [vmem:[%s1 + $0x1f0] sm:$0xf]
        %v608 = vld [vmem:[%s1 + $0x1f4] sm:$0xf]
        %v609 = vld [vmem:[%s1 + $0x1f8] sm:$0xf]
        %v610 = vld [vmem:[%s1 + $0x1fc] sm:$0xf]
        %v611 = vld [vmem:[%s1 + $0x200] sm:$0xf]
        %v612 = vld [vmem:[%s1 + $0x204] sm:$0xf]
        %v613 = vld [vmem:[%s1 + $0x208] sm:$0xf]
        %v614 = vld [vmem:[%s1 + $0x20c] sm:$0xf]
        %v615 = vld [vmem:[%s1 + $0x210] sm:$0xf]
        %v616 = vld [vmem:[%s1 + $0x214] sm:$0xf]
        %v617 = vld [vmem:[%s1 + $0x218] sm:$0xf]
        %v618 = vld [vmem:[%s1 + $0x21c] sm:$0xf]
        %v619 = vld [vmem:[%s1 + $0x220] sm:$0xf]
        %v620 = vld [vmem:[%s1 + $0x224] sm:$0xf]
        %v621 = vld [vmem:[%s1 + $0x228] sm:$0xf]
        %v622 = vld [vmem:[%s1 + $0x22c] sm:$0xf]
        %v623 = vld [vmem:[%s1 + $0x230] sm:$0xf]
        %v624 = vld [vmem:[%s1 + $0x234] sm:$0xf]
        %v625 = vld [vmem:[%s1 + $0x238] sm:$0xf]
        %v626 = vld [vmem:[%s1 + $0x23c] sm:$0xf]
        %v627 = vld [vmem:[%s2] sm:$0x1]
        %v629 = vperm.slane %v627, 0
        %v631 = vpack.c.b16 %v246, %v244
        %v632 = vpack.c.b16 %v453, %v449
        %v633 = vpack.c.b16 %v454, %v450
        %v634 = vpack.c.b16 %v342, %v340
        %v635 = vpack.c.b16 %v455, %v451
        %v636 = vpack.c.b16 %v456, %v452
        %v637 = vpack.c.b16 %v248, %v246
        %v638 = vpack.c.b16 %v457, %v453
        %v639 = vpack.c.b16 %v458, %v454
        %v640 = vpack.c.b16 %v250, %v248
        %v641 = vpack.c.b16 %v461, %v457
        %v642 = vpack.c.b16 %v462, %v458
        %v643 = vpack.c.b16 %v346, %v344
        %v644 = vpack.c.b16 %v463, %v459
        %v645 = vpack.c.b16 %v464, %v460
        %v646 = vpack.c.b16 %v252, %v250
        %v647 = vpack.c.b16 %v465, %v461
        %v648 = vpack.c.b16 %v466, %v462
        %v649 = vpack.c.b16 %v254, %v252
        %v650 = vpack.c.b16 %v469, %v465
        %v651 = vpack.c.b16 %v470, %v466
        %v652 = vpack.c.b16 %v350, %v348
        %v653 = vpack.c.b16 %v471, %v467
        %v654 = vpack.c.b16 %v472, %v468
        %v655 = vpack.c.b16 %v256, %v254
        %v656 = vpack.c.b16 %v473, %v469
        %v657 = vpack.c.b16 %v474, %v470
        %v658 = vpack.c.b16 %v258, %v256
        %v659 = vpack.c.b16 %v477, %v473
        %v660 = vpack.c.b16 %v478, %v474
        %v661 = vpack.c.b16 %v354, %v352
        %v662 = vpack.c.b16 %v479, %v475
        %v663 = vpack.c.b16 %v480, %v476
        %v664 = vpack.c.b16 %v422, %v258
        %v665 = vpack.c.b16 %v481, %v477
        %v666 = vpack.c.b16 %v482, %v478
        %v847 = vunpack.c.l.b16 %v483
        %v848 = vunpack.c.l.b16 %v484
        %v849 = vunpack.c.l.b16 %v485
        %v850 = vunpack.c.l.b16 %v486
        %v851 = vunpack.c.l.b16 %v487
        %v852 = vunpack.c.l.b16 %v488
        %v853 = vunpack.c.l.b16 %v489
        %v854 = vunpack.c.l.b16 %v490
        %v855 = vunpack.c.l.b16 %v491
        %v856 = vunpack.c.l.b16 %v492
        %v857 = vunpack.c.l.b16 %v493
        %v858 = vunpack.c.l.b16 %v494
        %v859 = vunpack.c.l.b16 %v495
        %v860 = vunpack.c.l.b16 %v496
        %v861 = vunpack.c.l.b16 %v497
        %v862 = vunpack.c.l.b16 %v498
        %v863 = vunpack.c.l.b16 %v499
        %v864 = vunpack.c.l.b16 %v500
        %v865 = vunpack.c.l.b16 %v501
        %v866 = vunpack.c.l.b16 %v502
        %v867 = vunpack.c.l.b16 %v503
        %v868 = vunpack.c.l.b16 %v504
        %v869 = vunpack.c.l.b16 %v505
        %v870 = vunpack.c.l.b16 %v506
        %v871 = vunpack.c.l.b16 %v507
        %v872 = vunpack.c.l.b16 %v508
        %v873 = vunpack.c.l.b16 %v509
        %v874 = vunpack.c.l.b16 %v510
        %v875 = vunpack.c.l.b16 %v511
        %v876 = vunpack.c.l.b16 %v512
        %v877 = vunpack.c.l.b16 %v513
        %v878 = vunpack.c.l.b16 %v514
        %v879 = vunpack.c.l.b16 %v515
        %v880 = vunpack.c.l.b16 %v516
        %v881 = vunpack.c.l.b16 %v517
        %v882 = vunpack.c.l.b16 %v518
        %v883 = vunpack.c.l.b16 %v519
        %v884 = vunpack.c.l.b16 %v520
        %v885 = vunpack.c.l.b16 %v521
        %v886 = vunpack.c.l.b16 %v522
        %v887 = vunpack.c.l.b16 %v523
        %v888 = vunpack.c.l.b16 %v524
        %v889 = vunpack.c.l.b16 %v525
        %v890 = vunpack.c.l.b16 %v526
        %v891 = vunpack.c.l.b16 %v527
        %v892 = vunpack.c.l.b16 %v528
        %v893 = vunpack.c.l.b16 %v529
        %v894 = vunpack.c.l.b16 %v530
        %v895 = vunpack.c.l.b16 %v531
        %v896 = vunpack.c.l.b16 %v532
        %v897 = vunpack.c.l.b16 %v533
        %v898 = vunpack.c.l.b16 %v534
        %v899 = vunpack.c.l.b16 %v535
        %v900 = vunpack.c.l.b16 %v536
        %v901 = vunpack.c.l.b16 %v537
        %v902 = vunpack.c.l.b16 %v538
        %v903 = vunpack.c.l.b16 %v539
        %v904 = vunpack.c.l.b16 %v540
        %v905 = vunpack.c.l.b16 %v541
        %v906 = vunpack.c.l.b16 %v542
        %v907 = vunpack.c.l.b16 %v543
        %v908 = vunpack.c.l.b16 %v544
        %v909 = vunpack.c.l.b16 %v545
        %v910 = vunpack.c.l.b16 %v546
        %v911 = vunpack.c.l.b16 %v547
        %v912 = vunpack.c.l.b16 %v548
        %v913 = vunpack.c.l.b16 %v549
        %v914 = vunpack.c.l.b16 %v550
        %v915 = vunpack.c.l.b16 %v551
        %v916 = vunpack.c.l.b16 %v552
        %v917 = vunpack.c.l.b16 %v553
        %v918 = vunpack.c.l.b16 %v554
        %v919 = vunpack.c.l.b16 %v555
        %v920 = vunpack.c.l.b16 %v556
        %v921 = vunpack.c.l.b16 %v557
        %v922 = vunpack.c.l.b16 %v558
        %v923 = vunpack.c.l.b16 %v559
        %v924 = vunpack.c.l.b16 %v560
        %v925 = vunpack.c.l.b16 %v561
        %v926 = vunpack.c.l.b16 %v562
        %v927 = vunpack.c.l.b16 %v563
        %v928 = vunpack.c.l.b16 %v564
        %v929 = vunpack.c.l.b16 %v565
        %v930 = vunpack.c.l.b16 %v566
        %v931 = vunpack.c.l.b16 %v567
        %v932 = vunpack.c.l.b16 %v568
        %v933 = vunpack.c.l.b16 %v569
        %v934 = vunpack.c.l.b16 %v570
        %v935 = vunpack.c.l.b16 %v571
        %v936 = vunpack.c.l.b16 %v572
        %v937 = vunpack.c.l.b16 %v573
        %v938 = vunpack.c.l.b16 %v574
        %v939 = vunpack.c.l.b16 %v575
        %v940 = vunpack.c.l.b16 %v576
        %v941 = vunpack.c.l.b16 %v577
        %v942 = vunpack.c.l.b16 %v578
        %v943 = vunpack.c.l.b16 %v579
        %v944 = vunpack.c.l.b16 %v580
        %v945 = vunpack.c.l.b16 %v581
        %v946 = vunpack.c.l.b16 %v582
        %v947 = vunpack.c.l.b16 %v583
        %v948 = vunpack.c.l.b16 %v584
        %v949 = vunpack.c.l.b16 %v585
        %v950 = vunpack.c.l.b16 %v586
        %v951 = vunpack.c.l.b16 %v587
        %v952 = vunpack.c.l.b16 %v588
        %v953 = vunpack.c.l.b16 %v589
        %v954 = vunpack.c.l.b16 %v590
        %v955 = vunpack.c.l.b16 %v591
        %v956 = vunpack.c.l.b16 %v592
        %v957 = vunpack.c.l.b16 %v593
        %v958 = vunpack.c.l.b16 %v594
        %v959 = vunpack.c.l.b16 %v595
        %v960 = vunpack.c.l.b16 %v596
        %v961 = vunpack.c.l.b16 %v597
        %v962 = vunpack.c.l.b16 %v598
        %v963 = vunpack.c.l.b16 %v599
        %v964 = vunpack.c.l.b16 %v600
        %v965 = vunpack.c.l.b16 %v601
        %v966 = vunpack.c.l.b16 %v602
        %v967 = vunpack.c.l.b16 %v603
        %v968 = vunpack.c.l.b16 %v604
        %v969 = vunpack.c.l.b16 %v605
        %v970 = vunpack.c.l.b16 %v606
        %v971 = vunpack.c.l.b16 %v607
        %v972 = vunpack.c.l.b16 %v608
        %v973 = vunpack.c.l.b16 %v609
        %v974 = vunpack.c.l.b16 %v610
        %v975 = vunpack.c.l.b16 %v611
        %v976 = vunpack.c.l.b16 %v612
        %v977 = vunpack.c.l.b16 %v613
        %v978 = vunpack.c.l.b16 %v614
        %v979 = vunpack.c.l.b16 %v615
        %v980 = vunpack.c.l.b16 %v616
        %v981 = vunpack.c.l.b16 %v617
        %v982 = vunpack.c.l.b16 %v618
        %v983 = vunpack.c.l.b16 %v619
        %v984 = vunpack.c.l.b16 %v620
        %v985 = vunpack.c.l.b16 %v621
        %v986 = vunpack.c.l.b16 %v622
        %v987 = vunpack.c.l.b16 %v623
        %v988 = vunpack.c.l.b16 %v624
        %v989 = vunpack.c.l.b16 %v625
        %v990 = vunpack.c.l.b16 %v626
        %v991 = vpack.c.b16 %v848, %v847
        %v992 = vpack.c.b16 %v850, %v849
        %v993 = vpack.c.b16 %v852, %v851
        %v994 = vpack.c.b16 %v854, %v853
        %v995 = vpack.c.b16 %v856, %v855
        %v996 = vpack.c.b16 %v858, %v857
        %v997 = vpack.c.b16 %v860, %v859
        %v998 = vpack.c.b16 %v862, %v861
        %v999 = vpack.c.b16 %v864, %v863
        %v1000 = vpack.c.b16 %v866, %v865
        %v1001 = vpack.c.b16 %v868, %v867
        %v1002 = vpack.c.b16 %v870, %v869
        %v1003 = vpack.c.b16 %v872, %v871
        %v1004 = vpack.c.b16 %v874, %v873
        %v1005 = vpack.c.b16 %v876, %v875
        %v1006 = vpack.c.b16 %v878, %v877
        %v1007 = vpack.c.b16 %v880, %v879
        %v1008 = vpack.c.b16 %v882, %v881
        %v1009 = vpack.c.b16 %v884, %v883
        %v1010 = vpack.c.b16 %v886, %v885
        %v1011 = vpack.c.b16 %v888, %v887
        %v1012 = vpack.c.b16 %v890, %v889
        %v1013 = vpack.c.b16 %v892, %v891
        %v1014 = vpack.c.b16 %v894, %v893
        %v1015 = vpack.c.b16 %v896, %v895
        %v1016 = vpack.c.b16 %v898, %v897
        %v1017 = vpack.c.b16 %v900, %v899
        %v1018 = vpack.c.b16 %v902, %v901
        %v1019 = vpack.c.b16 %v904, %v903
        %v1020 = vpack.c.b16 %v906, %v905
        %v1021 = vpack.c.b16 %v908, %v907
        %v1022 = vpack.c.b16 %v910, %v909
        %v1023 = vpack.c.b16 %v912, %v911
        %v1024 = vpack.c.b16 %v914, %v913
        %v1025 = vpack.c.b16 %v916, %v915
        %v1026 = vpack.c.b16 %v918, %v917
        %v1027 = vpack.c.b16 %v920, %v919
        %v1028 = vpack.c.b16 %v922, %v921
        %v1029 = vpack.c.b16 %v924, %v923
        %v1030 = vpack.c.b16 %v926, %v925
        %v1031 = vpack.c.b16 %v928, %v927
        %v1032 = vpack.c.b16 %v930, %v929
        %v1033 = vpack.c.b16 %v932, %v931
        %v1034 = vpack.c.b16 %v934, %v933
        %v1035 = vpack.c.b16 %v936, %v935
        %v1036 = vpack.c.b16 %v938, %v937
        %v1037 = vpack.c.b16 %v940, %v939
        %v1038 = vpack.c.b16 %v942, %v941
        %v1039 = vpack.c.b16 %v944, %v943
        %v1040 = vpack.c.b16 %v946, %v945
        %v1041 = vpack.c.b16 %v948, %v947
        %v1042 = vpack.c.b16 %v950, %v949
        %v1043 = vpack.c.b16 %v952, %v951
        %v1044 = vpack.c.b16 %v954, %v953
        %v1045 = vpack.c.b16 %v956, %v955
        %v1046 = vpack.c.b16 %v958, %v957
        %v1047 = vpack.c.b16 %v960, %v959
        %v1048 = vpack.c.b16 %v962, %v961
        %v1049 = vpack.c.b16 %v964, %v963
        %v1050 = vpack.c.b16 %v966, %v965
        %v1051 = vpack.c.b16 %v968, %v967
        %v1052 = vpack.c.b16 %v970, %v969
        %v1053 = vpack.c.b16 %v972, %v971
        %v1054 = vpack.c.b16 %v974, %v973
        %v1055 = vpack.c.b16 %v976, %v975
        %v1056 = vpack.c.b16 %v978, %v977
        %v1057 = vpack.c.b16 %v980, %v979
        %v1058 = vpack.c.b16 %v982, %v981
        %v1059 = vpack.c.b16 %v984, %v983
        %v1060 = vpack.c.b16 %v986, %v985
        %v1061 = vpack.c.b16 %v988, %v987
        %v1062 = vpack.c.b16 %v990, %v989
        %1135 = vmatpush.bf16.msra.mxu0 %v998
        %1136 = vmatpush.bf16.msra.mxu0 %v997
        %1137 = vmatpush.bf16.msra.mxu0 %v996
        %1138 = vmatpush.bf16.msra.mxu0 %v995
        %1139 = vmatpush.bf16.msra.mxu0 %v994
        %1140 = vmatpush.bf16.msra.mxu0 %v993
        %1141 = vmatpush.bf16.msra.mxu0 %v992
        %1142 = vmatpush.bf16.msra.mxu0 %v991
        %1143 = vmatmul.bf16.gmra.mxu0 %v631
        %v1144 = vpop.f32.mrf.mxu0
        %v1145 = vadd.f32 %v629, %v1144
        %v1146 = vpop.f32.mrf.mxu0
        %v1147 = vadd.f32 %v629, %v1146
        %1148 = vmatmul.bf16.gmra.mxu0 %v640
        %v1149 = vpop.f32.mrf.mxu0
        %v1150 = vadd.f32 %v629, %v1149
        %v1151 = vpop.f32.mrf.mxu0
        %v1152 = vadd.f32 %v629, %v1151
        %1153 = vmatmul.bf16.gmra.mxu0 %v649
        %v1154 = vpop.f32.mrf.mxu0
        %v1155 = vadd.f32 %v629, %v1154
        %v1156 = vpop.f32.mrf.mxu0
        %v1157 = vadd.f32 %v629, %v1156
        %1158 = vmatmul.bf16.gmra.mxu0 %v658
        %v1159 = vpop.f32.mrf.mxu0
        %v1160 = vadd.f32 %v629, %v1159
        %v1161 = vpop.f32.mrf.mxu0
        %v1162 = vadd.f32 %v629, %v1161
        %1163 = vdwg.mxu0
        %1164 = vmatpush.bf16.msra.mxu0 %v1006
        %1165 = vmatpush.bf16.msra.mxu0 %v1005
        %1166 = vmatpush.bf16.msra.mxu0 %v1004
        %1167 = vmatpush.bf16.msra.mxu0 %v1003
        %1168 = vmatpush.bf16.msra.mxu0 %v1002
        %1169 = vmatpush.bf16.msra.mxu0 %v1001
        %1170 = vmatpush.bf16.msra.mxu0 %v1000
        %1171 = vmatpush.bf16.msra.mxu0 %v999
        %1172 = vmatmul.bf16.gmra.mxu0 %v632
        %v1173 = vpop.f32.mrf.mxu0
        %v1174 = vadd.f32 %v1145, %v1173
        %v1175 = vpop.f32.mrf.mxu0
        %v1176 = vadd.f32 %v1147, %v1175
        %1177 = vmatmul.bf16.gmra.mxu0 %v641
        %v1178 = vpop.f32.mrf.mxu0
        %v1179 = vadd.f32 %v1150, %v1178
        %v1180 = vpop.f32.mrf.mxu0
        %v1181 = vadd.f32 %v1152, %v1180
        %1182 = vmatmul.bf16.gmra.mxu0 %v650
        %v1183 = vpop.f32.mrf.mxu0
        %v1184 = vadd.f32 %v1155, %v1183
        %v1185 = vpop.f32.mrf.mxu0
        %v1186 = vadd.f32 %v1157, %v1185
        %1187 = vmatmul.bf16.gmra.mxu0 %v659
        %v1188 = vpop.f32.mrf.mxu0
        %v1189 = vadd.f32 %v1160, %v1188
        %v1190 = vpop.f32.mrf.mxu0
        %v1191 = vadd.f32 %v1162, %v1190
        %1192 = vdwg.mxu0
        %1193 = vmatpush.bf16.msra.mxu0 %v1014
        %1194 = vmatpush.bf16.msra.mxu0 %v1013
        %1195 = vmatpush.bf16.msra.mxu0 %v1012
        %1196 = vmatpush.bf16.msra.mxu0 %v1011
        %1197 = vmatpush.bf16.msra.mxu0 %v1010
        %1198 = vmatpush.bf16.msra.mxu0 %v1009
        %1199 = vmatpush.bf16.msra.mxu0 %v1008
        %1200 = vmatpush.bf16.msra.mxu0 %v1007
        %1201 = vmatmul.bf16.gmra.mxu0 %v633
        %v1202 = vpop.f32.mrf.mxu0
        %v1203 = vadd.f32 %v1174, %v1202
        %v1204 = vpop.f32.mrf.mxu0
        %v1205 = vadd.f32 %v1176, %v1204
        %1206 = vmatmul.bf16.gmra.mxu0 %v642
        %v1207 = vpop.f32.mrf.mxu0
        %v1208 = vadd.f32 %v1179, %v1207
        %v1209 = vpop.f32.mrf.mxu0
        %v1210 = vadd.f32 %v1181, %v1209
        %1211 = vmatmul.bf16.gmra.mxu0 %v651
        %v1212 = vpop.f32.mrf.mxu0
        %v1213 = vadd.f32 %v1184, %v1212
        %v1214 = vpop.f32.mrf.mxu0
        %v1215 = vadd.f32 %v1186, %v1214
        %1216 = vmatmul.bf16.gmra.mxu0 %v660
        %v1217 = vpop.f32.mrf.mxu0
        %v1218 = vadd.f32 %v1189, %v1217
        %v1219 = vpop.f32.mrf.mxu0
        %v1220 = vadd.f32 %v1191, %v1219
        %1221 = vdwg.mxu0
        %1222 = vmatpush.bf16.msra.mxu0 %v1022
        %1223 = vmatpush.bf16.msra.mxu0 %v1021
        %1224 = vmatpush.bf16.msra.mxu0 %v1020
        %1225 = vmatpush.bf16.msra.mxu0 %v1019
        %1226 = vmatpush.bf16.msra.mxu0 %v1018
        %1227 = vmatpush.bf16.msra.mxu0 %v1017
        %1228 = vmatpush.bf16.msra.mxu0 %v1016
        %1229 = vmatpush.bf16.msra.mxu0 %v1015
        %1230 = vmatmul.bf16.gmra.mxu0 %v634
        %v1231 = vpop.f32.mrf.mxu0
        %v1232 = vadd.f32 %v1203, %v1231
        %v1233 = vpop.f32.mrf.mxu0
        %v1234 = vadd.f32 %v1205, %v1233
        %1235 = vmatmul.bf16.gmra.mxu0 %v643
        %v1236 = vpop.f32.mrf.mxu0
        %v1237 = vadd.f32 %v1208, %v1236
        %v1238 = vpop.f32.mrf.mxu0
        %v1239 = vadd.f32 %v1210, %v1238
        %1240 = vmatmul.bf16.gmra.mxu0 %v652
        %v1241 = vpop.f32.mrf.mxu0
        %v1242 = vadd.f32 %v1213, %v1241
        %v1243 = vpop.f32.mrf.mxu0
        %v1244 = vadd.f32 %v1215, %v1243
        %1245 = vmatmul.bf16.gmra.mxu0 %v661
        %v1246 = vpop.f32.mrf.mxu0
        %v1247 = vadd.f32 %v1218, %v1246
        %v1248 = vpop.f32.mrf.mxu0
        %v1249 = vadd.f32 %v1220, %v1248
        %1250 = vdwg.mxu0
        %1251 = vmatpush.bf16.msra.mxu0 %v1030
        %1252 = vmatpush.bf16.msra.mxu0 %v1029
        %1253 = vmatpush.bf16.msra.mxu0 %v1028
        %1254 = vmatpush.bf16.msra.mxu0 %v1027
        %1255 = vmatpush.bf16.msra.mxu0 %v1026
        %1256 = vmatpush.bf16.msra.mxu0 %v1025
        %1257 = vmatpush.bf16.msra.mxu0 %v1024
        %1258 = vmatpush.bf16.msra.mxu0 %v1023
        %1259 = vmatmul.bf16.gmra.mxu0 %v635
        %v1260 = vpop.f32.mrf.mxu0
        %v1261 = vadd.f32 %v1232, %v1260
        %v1262 = vpop.f32.mrf.mxu0
        %v1263 = vadd.f32 %v1234, %v1262
        %1264 = vmatmul.bf16.gmra.mxu0 %v644
        %v1265 = vpop.f32.mrf.mxu0
        %v1266 = vadd.f32 %v1237, %v1265
        %v1267 = vpop.f32.mrf.mxu0
        %v1268 = vadd.f32 %v1239, %v1267
        %1269 = vmatmul.bf16.gmra.mxu0 %v653
        %v1270 = vpop.f32.mrf.mxu0
        %v1271 = vadd.f32 %v1242, %v1270
        %v1272 = vpop.f32.mrf.mxu0
        %v1273 = vadd.f32 %v1244, %v1272
        %1274 = vmatmul.bf16.gmra.mxu0 %v662
        %v1275 = vpop.f32.mrf.mxu0
        %v1276 = vadd.f32 %v1247, %v1275
        %v1277 = vpop.f32.mrf.mxu0
        %v1278 = vadd.f32 %v1249, %v1277
        %1279 = vdwg.mxu0
        %1280 = vmatpush.bf16.msra.mxu0 %v1038
        %1281 = vmatpush.bf16.msra.mxu0 %v1037
        %1282 = vmatpush.bf16.msra.mxu0 %v1036
        %1283 = vmatpush.bf16.msra.mxu0 %v1035
        %1284 = vmatpush.bf16.msra.mxu0 %v1034
        %1285 = vmatpush.bf16.msra.mxu0 %v1033
        %1286 = vmatpush.bf16.msra.mxu0 %v1032
        %1287 = vmatpush.bf16.msra.mxu0 %v1031
        %1288 = vmatmul.bf16.gmra.mxu0 %v636
        %v1289 = vpop.f32.mrf.mxu0
        %v1290 = vadd.f32 %v1261, %v1289
        %v1291 = vpop.f32.mrf.mxu0
        %v1292 = vadd.f32 %v1263, %v1291
        %1293 = vmatmul.bf16.gmra.mxu0 %v645
        %v1294 = vpop.f32.mrf.mxu0
        %v1295 = vadd.f32 %v1266, %v1294
        %v1296 = vpop.f32.mrf.mxu0
        %v1297 = vadd.f32 %v1268, %v1296
        %1298 = vmatmul.bf16.gmra.mxu0 %v654
        %v1299 = vpop.f32.mrf.mxu0
        %v1300 = vadd.f32 %v1271, %v1299
        %v1301 = vpop.f32.mrf.mxu0
        %v1302 = vadd.f32 %v1273, %v1301
        %1303 = vmatmul.bf16.gmra.mxu0 %v663
        %v1304 = vpop.f32.mrf.mxu0
        %v1305 = vadd.f32 %v1276, %v1304
        %v1306 = vpop.f32.mrf.mxu0
        %v1307 = vadd.f32 %v1278, %v1306
        %1308 = vdwg.mxu0
        %1309 = vmatpush.bf16.msra.mxu0 %v1046
        %1310 = vmatpush.bf16.msra.mxu0 %v1045
        %1311 = vmatpush.bf16.msra.mxu0 %v1044
        %1312 = vmatpush.bf16.msra.mxu0 %v1043
        %1313 = vmatpush.bf16.msra.mxu0 %v1042
        %1314 = vmatpush.bf16.msra.mxu0 %v1041
        %1315 = vmatpush.bf16.msra.mxu0 %v1040
        %1316 = vmatpush.bf16.msra.mxu0 %v1039
        %1317 = vmatmul.bf16.gmra.mxu0 %v637
        %v1318 = vpop.f32.mrf.mxu0
        %v1319 = vadd.f32 %v1290, %v1318
        %v1320 = vpop.f32.mrf.mxu0
        %v1321 = vadd.f32 %v1292, %v1320
        %1322 = vmatmul.bf16.gmra.mxu0 %v646
        %v1323 = vpop.f32.mrf.mxu0
        %v1324 = vadd.f32 %v1295, %v1323
        %v1325 = vpop.f32.mrf.mxu0
        %v1326 = vadd.f32 %v1297, %v1325
        %1327 = vmatmul.bf16.gmra.mxu0 %v655
        %v1328 = vpop.f32.mrf.mxu0
        %v1329 = vadd.f32 %v1300, %v1328
        %v1330 = vpop.f32.mrf.mxu0
        %v1331 = vadd.f32 %v1302, %v1330
        %1332 = vmatmul.bf16.gmra.mxu0 %v664
        %v1333 = vpop.f32.mrf.mxu0
        %v1334 = vadd.f32 %v1305, %v1333
        %v1335 = vpop.f32.mrf.mxu0
        %v1336 = vadd.f32 %v1307, %v1335
        %1337 = vdwg.mxu0
        %1338 = vmatpush.bf16.msra.mxu0 %v1054
        %1339 = vmatpush.bf16.msra.mxu0 %v1053
        %1340 = vmatpush.bf16.msra.mxu0 %v1052
        %1341 = vmatpush.bf16.msra.mxu0 %v1051
        %1342 = vmatpush.bf16.msra.mxu0 %v1050
        %1343 = vmatpush.bf16.msra.mxu0 %v1049
        %1344 = vmatpush.bf16.msra.mxu0 %v1048
        %1345 = vmatpush.bf16.msra.mxu0 %v1047
        %1346 = vmatmul.bf16.gmra.mxu0 %v638
        %v1347 = vpop.f32.mrf.mxu0
        %v1348 = vadd.f32 %v1319, %v1347
        %v1349 = vpop.f32.mrf.mxu0
        %v1350 = vadd.f32 %v1321, %v1349
        %1351 = vmatmul.bf16.gmra.mxu0 %v647
        %v1352 = vpop.f32.mrf.mxu0
        %v1353 = vadd.f32 %v1324, %v1352
        %v1354 = vpop.f32.mrf.mxu0
        %v1355 = vadd.f32 %v1326, %v1354
        %1356 = vmatmul.bf16.gmra.mxu0 %v656
        %v1357 = vpop.f32.mrf.mxu0
        %v1358 = vadd.f32 %v1329, %v1357
        %v1359 = vpop.f32.mrf.mxu0
        %v1360 = vadd.f32 %v1331, %v1359
        %1361 = vmatmul.bf16.gmra.mxu0 %v665
        %v1362 = vpop.f32.mrf.mxu0
        %v1363 = vadd.f32 %v1334, %v1362
        %v1364 = vpop.f32.mrf.mxu0
        %v1365 = vadd.f32 %v1336, %v1364
        %1366 = vdwg.mxu0
        %1367 = vmatpush.bf16.msra.mxu0 %v1062
        %1368 = vmatpush.bf16.msra.mxu0 %v1061
        %1369 = vmatpush.bf16.msra.mxu0 %v1060
        %1370 = vmatpush.bf16.msra.mxu0 %v1059
        %1371 = vmatpush.bf16.msra.mxu0 %v1058
        %1372 = vmatpush.bf16.msra.mxu0 %v1057
        %1373 = vmatpush.bf16.msra.mxu0 %v1056
        %1374 = vmatpush.bf16.msra.mxu0 %v1055
        %1375 = vmatmul.bf16.gmra.mxu0 %v639
        %v1376 = vpop.f32.mrf.mxu0
        %v1377 = vadd.f32 %v1348, %v1376
        %v1378 = vpop.f32.mrf.mxu0
        %v1379 = vadd.f32 %v1350, %v1378
        %1380 = vmatmul.bf16.gmra.mxu0 %v648
        %v1381 = vpop.f32.mrf.mxu0
        %v1382 = vadd.f32 %v1353, %v1381
        %v1383 = vpop.f32.mrf.mxu0
        %v1384 = vadd.f32 %v1355, %v1383
        %1385 = vmatmul.bf16.gmra.mxu0 %v657
        %v1386 = vpop.f32.mrf.mxu0
        %v1387 = vadd.f32 %v1358, %v1386
        %v1388 = vpop.f32.mrf.mxu0
        %v1389 = vadd.f32 %v1360, %v1388
        %1390 = vmatmul.bf16.gmra.mxu0 %v666
        %v1391 = vpop.f32.mrf.mxu0
        %v1392 = vadd.f32 %v1363, %v1391
        %v1393 = vpop.f32.mrf.mxu0
        %v1394 = vadd.f32 %v1365, %v1393
        %1395 = vdwg.mxu0
        %vm1396 = vcmp.ge.f32.partialorder %v1377, 0.0
        %vm1397 = vcmp.ge.f32.partialorder %v1379, 0.0
        %vm1398 = vcmp.ge.f32.partialorder %v1382, 0.0
        %vm1399 = vcmp.ge.f32.partialorder %v1384, 0.0
        %vm1400 = vcmp.ge.f32.partialorder %v1387, 0.0
        %vm1401 = vcmp.ge.f32.partialorder %v1389, 0.0
        %vm1402 = vcmp.ge.f32.partialorder %v1392, 0.0
        %vm1403 = vcmp.ge.f32.partialorder %v1394, 0.0
        %v1404 = vmul.f32 %v1377, 0.01
        %v1405 = vmul.f32 %v1379, 0.01
        %v1406 = vmul.f32 %v1382, 0.01
        %v1407 = vmul.f32 %v1384, 0.01
        %v1408 = vmul.f32 %v1387, 0.01
        %v1409 = vmul.f32 %v1389, 0.01
        %v1410 = vmul.f32 %v1392, 0.01
        %v1411 = vmul.f32 %v1394, 0.01
        %v1412 = vsel %vm1396, %v1377, %v1404
        %v1413 = vsel %vm1397, %v1379, %v1405
        %v1414 = vsel %vm1398, %v1382, %v1406
        %v1415 = vsel %vm1399, %v1384, %v1407
        %v1416 = vsel %vm1400, %v1387, %v1408
        %v1417 = vsel %vm1401, %v1389, %v1409
        %v1418 = vsel %vm1402, %v1392, %v1410
        %v1419 = vsel %vm1403, %v1394, %v1411
        %v1420 = vpack.c.bf16 %v1412, %v1412
        %v1421 = vpack.c.bf16 %v1413, %v1413
        %v1422 = vpack.c.bf16 %v1414, %v1414
        %v1423 = vpack.c.bf16 %v1415, %v1415
        %v1424 = vpack.c.bf16 %v1416, %v1416
        %v1425 = vpack.c.bf16 %v1417, %v1417
        %v1426 = vpack.c.bf16 %v1418, %v1418
        %v1427 = vpack.c.bf16 %v1419, %v1419
        %1428 = vst [vmem:[%s166] sm:$0xf] %v1420
        %1429 = vst [vmem:[%s166 + $0x4] sm:$0xf] %v1421
        %1430 = vst [vmem:[%s166 + $0x8] sm:$0xf] %v1422
        %1431 = vst [vmem:[%s166 + $0xc] sm:$0xf] %v1423
        %1432 = vst [vmem:[%s166 + $0x10] sm:$0xf] %v1424
        %1433 = vst [vmem:[%s166 + $0x14] sm:$0xf] %v1425
        %1434 = vst [vmem:[%s166 + $0x18] sm:$0xf] %v1426
        %1435 = vst [vmem:[%s166 + $0x1c] sm:$0xf] %v1427
        %s1436 = sand.u32 %s93, 1
        %s1437 = scalar_lea.sflag [#allocation3], %s1436
        %s1438 = sand.u32 %s93, 1
        %s1439 = smul.addr %s1438, 32
        %s1440 = scalar_lea.vmem [#allocation2], %s1439
        // Predicated region
        $region33: #{tpu_custom_call.1} parent=31 // pred_check
          %p1441 = pneg %p103
        $region34: #{tpu_custom_call.1} parent=31 // pred_check_branch
          %1443 = sbr.rel (%p1441) target = $region36
        $region35: #{tpu_custom_call.1} parent=31 // pred_region
          %1445 = vsyncadd %s1437, 0
          %s1446 = smul.addr %s17, 8
          %s1447 = smul.addr %s1446, 4
          %s1448 = scalar_lea.hbm %s3, %s1447
          %s1449 = sshll.u32 %s1440, 4
          %s1450 = int_to_ptr.vmem [resolvable:$true] %s1449
          %s1451 = sshll.u32 %s1448, 4
          %s1452 = int_to_ptr.hbm [resolvable:$true] %s1451
          %1457 = dma.vmem_to_hbm [thread:$0]  %s1450, 512, %s1452, %s1437, 64, 64, 4
        $region36: #{tpu_custom_call.1} parent=31 // pred_fallthru
          _
      $region32: #{tpu_custom_call.1} parent=5 // pred_fallthru
        _
      %p1458 = scmp.le.s32.totalorder 2, %s12
      // Predicated region
      $region37: #{tpu_custom_call.1} parent=5 // pred_check
        %p1459 = pneg %p1458
      $region38: #{tpu_custom_call.1} parent=5 // pred_check_branch
        %1461 = sbr.rel (%p1459) target = $region40
      $region39: #{tpu_custom_call.1} parent=5 // pred_region
        %s1462 = ssub.s32 %s12, 2
        // Predicated region
        $region41: #{tpu_custom_call.1} parent=39 // pred_check
          %p1463 = pneg %p109
        $region42: #{tpu_custom_call.1} parent=39 // pred_check_branch
          %1465 = sbr.rel (%p1463) target = $region44
        $region43: #{tpu_custom_call.1} parent=39 // pred_region
          %s1466 = sand.u32 %s94, 1
          %s1467 = scalar_lea.sflag [#allocation3], %s1466
          %s1468 = sand.u32 %s94, 1
          %s1469 = smul.addr %s1468, 32
          %s1470 = scalar_lea.vmem [#allocation2], %s1469
          %1472 = dma.done %s1467, 512
        $region44: #{tpu_custom_call.1} parent=39 // pred_fallthru
          _
      $region40: #{tpu_custom_call.1} parent=5 // pred_fallthru
        _
    $region6: #{tpu_custom_call.1} parent=1 // loop_footer
      %s16 = sadd.s32 1, %s12
    $region7: #{tpu_custom_call.1} parent=1 // loop_footer_branch
      %11 = sbr.rel target = $region3
    $region8: #{tpu_custom_call.1} parent=1 // loop_exit
      _
    %1473 = vsyncpa [#allocation3], 1
    %s1474 = scalar_lea.sflag [#allocation3], 1
    %1475 = vsyncpa %s1474, 1

</llo_original>
